<compile_context>
chip_gen: v5e
topology: v5e:2x2
jax: 0.10.0
libtpu: 0.0.40
codegen_flags: <defaults>
</compile_context>

<pallas_src>
import jax
import jax.numpy as jnp
from jax import lax
from jax.experimental import pallas as pl
from jax.experimental.pallas import tpu as pltpu


def _position_jitter_kernel(shift_ref, x_ref, o_ref):
    """shift_ref: SMEM int32[2] = (shift_h mod H, shift_w mod W), non-negative.

    x_ref / o_ref: one (C_blk, H, W) slab of the NCHW image (N dim squeezed).
    """
    sh = shift_ref[0]
    sw = shift_ref[1]
    c_blk = x_ref.shape[0]

    @pl.when(jnp.logical_and(sh == 0, sw == 0))
    def _():
        # Degenerate no-shift case: pure copy, skip both XLU passes.
        o_ref[...] = x_ref[...]

    @pl.when(jnp.logical_or(sh != 0, sw != 0))
    def _():
        def body(c, carry):
            plane = x_ref[c]                           # (H, W) plane
            plane = pltpu.roll(plane, sh, axis=0)      # roll along H (torch dim 2)
            plane = pltpu.roll(plane, sw, axis=1)      # roll along W (torch dim 3)
            o_ref[c] = plane
            return carry

        lax.fori_loop(0, c_blk, body, 0, unroll=c_blk <= 8)


def _choose_c_block(C, plane_bytes, target_bytes=4 << 20):
    """Largest divisor of C whose block (C_blk * plane) fits the byte budget."""
    best = 1
    for d in range(1, C + 1):
        if C % d == 0 and d * plane_bytes <= target_bytes:
            best = d
    return best


def position_jitter_tpu(image, shiftx, shifty):
    """Pallas equivalent of PositionJitter.forward for an NCHW image."""
    N, C, H, W = image.shape
    itemsize = jnp.dtype(image.dtype).itemsize
    plane_bytes = H * W * itemsize

    c_blk = _choose_c_block(C, plane_bytes)
    block_bytes = c_blk * plane_bytes
    # Double-buffered input + output ~= 4x block; leave a few MiB headroom.
    vmem_limit = max(32 << 20, 4 * block_bytes + (4 << 20))

    # Normalize shifts to non-negative values (matches torch.roll semantics).
    shifts = jnp.stack(
        [
            jnp.mod(jnp.asarray(shiftx, jnp.int32), jnp.int32(H)),
            jnp.mod(jnp.asarray(shifty, jnp.int32), jnp.int32(W)),
        ]
    ).astype(jnp.int32)

    total_bytes = 2 * image.size * itemsize  # read everything once, write once

    return pl.pallas_call(
        _position_jitter_kernel,
        out_shape=jax.ShapeDtypeStruct(image.shape, image.dtype),
        grid_spec=pltpu.PrefetchScalarGridSpec(
            num_scalar_prefetch=1,               # shifts -> SMEM, visible to kernel
            grid=(N, C // c_blk),
            in_specs=[
                pl.BlockSpec((None, c_blk, H, W), lambda n, cb, s: (n, cb, 0, 0)),
            ],
            out_specs=pl.BlockSpec((None, c_blk, H, W), lambda n, cb, s: (n, cb, 0, 0)),
        ),
        compiler_params=pltpu.CompilerParams(
            dimension_semantics=("parallel", "parallel"),
            vmem_limit_bytes=vmem_limit,
        ),
        cost_estimate=pl.CostEstimate(
            flops=0, transcendentals=0, bytes_accessed=total_bytes
        ),
    )(shifts, image)


if __name__ == "__main__":
    # PositionJitter(amount=4); no learnable parameters in this module.
    amount = 4

    key = jax.random.PRNGKey(0)
    k_img, k_x, k_y = jax.random.split(key, 3)

    # Small NCHW image. W=128 is lane-aligned (last dim -> 128-wide lane axis),
    # H=16 is sublane-aligned; blocks always cover full (H, W) so the cyclic
    # roll never touches padding.
    image = jax.random.normal(k_img, (2, 4, 16, 128), dtype=jnp.float32)

    # Equivalent of np.random.randint(-amount, amount), made deterministic via
    # PRNGKey(0) instead of host-side np.random state.
    # TODO(synk): host-side np.random draw replaced with jax.random (outside kernel).
    shiftx = jax.random.randint(k_x, (), -amount, amount, dtype=jnp.int32)
    shifty = jax.random.randint(k_y, (), -amount, amount, dtype=jnp.int32)

    out = position_jitter_tpu(image, shiftx, shifty)
    out = jax.block_until_ready(out)

    # Reference: torch.roll((sx, sy), (2, 3)) == jnp.roll(x, (sx, sy), axis=(2, 3))
    ref = jnp.roll(image, (int(shiftx), int(shifty)), axis=(2, 3))

    assert out.shape == image.shape and out.dtype == image.dtype
    assert bool(jnp.array_equal(out, ref)), "Pallas roll mismatch vs jnp.roll reference"

    # Exercise the degenerate no-shift fast path as well.
    out0 = jax.block_until_ready(position_jitter_tpu(image, 0, 0))
    assert bool(jnp.array_equal(out0, image)), "zero-shift path mismatch"

    print("KERNEL_OK")
</pallas_src>

<mosaic_0001>
module attributes {stable_mosaic.version = 11 : i64} {
  func.func @_position_jitter_kernel(%arg0: i32, %arg1: i32, %arg2: memref<2xi32, #tpu.memory_space<smem>>, %arg3: memref<1x4x16x128xf32, #tpu.memory_space<vmem>>, %arg4: memref<1x4x16x128xf32, #tpu.memory_space<vmem>>) attributes {dimension_semantics = [#tpu.dimension_semantics<parallel>, #tpu.dimension_semantics<parallel>], iteration_bounds = array<i64: 2, 1>, scalar_prefetch = 1 : i64, scratch_operands = 0 : i64, tpu.core_type = #tpu.core_type<tc>, window_params = [{transform_indices = @transform_0, window_bounds = array<i64: 1, 4, 16, 128>}, {transform_indices = @transform_1, window_bounds = array<i64: 1, 4, 16, 128>}]} {
    %c0 = arith.constant 0 : index
    %0 = memref.load %arg2[%c0] : memref<2xi32, #tpu.memory_space<smem>>
    %c1 = arith.constant 1 : index
    %1 = memref.load %arg2[%c1] : memref<2xi32, #tpu.memory_space<smem>>
    %c0_i32 = arith.constant 0 : i32
    %2 = arith.cmpi eq, %0, %c0_i32 : i32
    %c0_i32_0 = arith.constant 0 : i32
    %3 = arith.cmpi eq, %1, %c0_i32_0 : i32
    %4 = arith.andi %2, %3 : i1
    %5 = arith.extui %4 : i1 to i32
    %c0_i32_1 = arith.constant 0 : i32
    %6 = arith.cmpi ne, %5, %c0_i32_1 : i32
    scf.if %6 {
      %c0_5 = arith.constant 0 : index
      %c0_6 = arith.constant 0 : index
      %c0_7 = arith.constant 0 : index
      %c0_8 = arith.constant 0 : index
      %12 = vector.load %arg3[%c0_5, %c0_6, %c0_7, %c0_8] : memref<1x4x16x128xf32, #tpu.memory_space<vmem>>, vector<1x4x16x128xf32>
      %13 = vector.shape_cast %12 : vector<1x4x16x128xf32> to vector<4x16x128xf32>
      %c0_9 = arith.constant 0 : index
      %c0_10 = arith.constant 0 : index
      %c0_11 = arith.constant 0 : index
      %c0_12 = arith.constant 0 : index
      %14 = vector.load %arg4[%c0_9, %c0_10, %c0_11, %c0_12] : memref<1x4x16x128xf32, #tpu.memory_space<vmem>>, vector<1x4x16x128xf32>
      %15 = vector.shape_cast %14 : vector<1x4x16x128xf32> to vector<4x16x128xf32>
      %16 = vector.shape_cast %13 : vector<4x16x128xf32> to vector<1x4x16x128xf32>
      tpu.vector_store %arg4[%c0_9, %c0_10, %c0_11, %c0_12], %16 {strides = array<i32>} : memref<1x4x16x128xf32, #tpu.memory_space<vmem>>, vector<1x4x16x128xf32>,
    } else {
    }
    %c0_i32_2 = arith.constant 0 : i32
    %7 = arith.cmpi ne, %0, %c0_i32_2 : i32
    %c0_i32_3 = arith.constant 0 : i32
    %8 = arith.cmpi ne, %1, %c0_i32_3 : i32
    %9 = arith.ori %7, %8 : i1
    %10 = arith.extui %9 : i1 to i32
    %c0_i32_4 = arith.constant 0 : i32
    %11 = arith.cmpi ne, %10, %c0_i32_4 : i32
    scf.if %11 {
      %c0_i32_5 = arith.constant 0 : i32
      %c0_6 = arith.constant 0 : index
      %12 = arith.index_cast %c0_i32_5 : i32 to index
      %c0_7 = arith.constant 0 : index
      %c0_8 = arith.constant 0 : index
      %13 = vector.load %arg3[%c0_6, %12, %c0_7, %c0_8] : memref<1x4x16x128xf32, #tpu.memory_space<vmem>>, vector<1x1x16x128xf32>
      %14 = vector.shape_cast %13 : vector<1x1x16x128xf32> to vector<16x128xf32>
      %15 = tpu.dynamic_rotate %14 by %0 dim 0 : vector<16x128xf32>, i32 -> vector<16x128xf32>
      %16 = tpu.dynamic_rotate %15 by %1 dim 1 : vector<16x128xf32>, i32 -> vector<16x128xf32>
      %c0_9 = arith.constant 0 : index
      %17 = arith.index_cast %c0_i32_5 : i32 to index
      %c0_10 = arith.constant 0 : index
      %c0_11 = arith.constant 0 : index
      %18 = vector.load %arg4[%c0_9, %17, %c0_10, %c0_11] : memref<1x4x16x128xf32, #tpu.memory_space<vmem>>, vector<1x1x16x128xf32>
      %19 = vector.shape_cast %18 : vector<1x1x16x128xf32> to vector<16x128xf32>
      %20 = vector.shape_cast %16 : vector<16x128xf32> to vector<1x1x16x128xf32>
      tpu.vector_store %arg4[%c0_9, %17, %c0_10, %c0_11], %20 {strides = array<i32>} : memref<1x4x16x128xf32, #tpu.memory_space<vmem>>, vector<1x1x16x128xf32>,
      %c1_i32 = arith.constant 1 : i32
      %c0_12 = arith.constant 0 : index
      %21 = arith.index_cast %c1_i32 : i32 to index
      %c0_13 = arith.constant 0 : index
      %c0_14 = arith.constant 0 : index
      %22 = vector.load %arg3[%c0_12, %21, %c0_13, %c0_14] : memref<1x4x16x128xf32, #tpu.memory_space<vmem>>, vector<1x1x16x128xf32>
      %23 = vector.shape_cast %22 : vector<1x1x16x128xf32> to vector<16x128xf32>
      %24 = tpu.dynamic_rotate %23 by %0 dim 0 : vector<16x128xf32>, i32 -> vector<16x128xf32>
      %25 = tpu.dynamic_rotate %24 by %1 dim 1 : vector<16x128xf32>, i32 -> vector<16x128xf32>
      %c0_15 = arith.constant 0 : index
      %26 = arith.index_cast %c1_i32 : i32 to index
      %c0_16 = arith.constant 0 : index
      %c0_17 = arith.constant 0 : index
      %27 = vector.load %arg4[%c0_15, %26, %c0_16, %c0_17] : memref<1x4x16x128xf32, #tpu.memory_space<vmem>>, vector<1x1x16x128xf32>
      %28 = vector.shape_cast %27 : vector<1x1x16x128xf32> to vector<16x128xf32>
      %29 = vector.shape_cast %25 : vector<16x128xf32> to vector<1x1x16x128xf32>
      tpu.vector_store %arg4[%c0_15, %26, %c0_16, %c0_17], %29 {strides = array<i32>} : memref<1x4x16x128xf32, #tpu.memory_space<vmem>>, vector<1x1x16x128xf32>,
      %c2_i32 = arith.constant 2 : i32
      %c0_18 = arith.constant 0 : index
      %30 = arith.index_cast %c2_i32 : i32 to index
      %c0_19 = arith.constant 0 : index
      %c0_20 = arith.constant 0 : index
      %31 = vector.load %arg3[%c0_18, %30, %c0_19, %c0_20] : memref<1x4x16x128xf32, #tpu.memory_space<vmem>>, vector<1x1x16x128xf32>
      %32 = vector.shape_cast %31 : vector<1x1x16x128xf32> to vector<16x128xf32>
      %33 = tpu.dynamic_rotate %32 by %0 dim 0 : vector<16x128xf32>, i32 -> vector<16x128xf32>
      %34 = tpu.dynamic_rotate %33 by %1 dim 1 : vector<16x128xf32>, i32 -> vector<16x128xf32>
      %c0_21 = arith.constant 0 : index
      %35 = arith.index_cast %c2_i32 : i32 to index
      %c0_22 = arith.constant 0 : index
      %c0_23 = arith.constant 0 : index
      %36 = vector.load %arg4[%c0_21, %35, %c0_22, %c0_23] : memref<1x4x16x128xf32, #tpu.memory_space<vmem>>, vector<1x1x16x128xf32>
      %37 = vector.shape_cast %36 : vector<1x1x16x128xf32> to vector<16x128xf32>
      %38 = vector.shape_cast %34 : vector<16x128xf32> to vector<1x1x16x128xf32>
      tpu.vector_store %arg4[%c0_21, %35, %c0_22, %c0_23], %38 {strides = array<i32>} : memref<1x4x16x128xf32, #tpu.memory_space<vmem>>, vector<1x1x16x128xf32>,
      %c3_i32 = arith.constant 3 : i32
      %c0_24 = arith.constant 0 : index
      %39 = arith.index_cast %c3_i32 : i32 to index
      %c0_25 = arith.constant 0 : index
      %c0_26 = arith.constant 0 : index
      %40 = vector.load %arg3[%c0_24, %39, %c0_25, %c0_26] : memref<1x4x16x128xf32, #tpu.memory_space<vmem>>, vector<1x1x16x128xf32>
      %41 = vector.shape_cast %40 : vector<1x1x16x128xf32> to vector<16x128xf32>
      %42 = tpu.dynamic_rotate %41 by %0 dim 0 : vector<16x128xf32>, i32 -> vector<16x128xf32>
      %43 = tpu.dynamic_rotate %42 by %1 dim 1 : vector<16x128xf32>, i32 -> vector<16x128xf32>
      %c0_27 = arith.constant 0 : index
      %44 = arith.index_cast %c3_i32 : i32 to index
      %c0_28 = arith.constant 0 : index
      %c0_29 = arith.constant 0 : index
      %45 = vector.load %arg4[%c0_27, %44, %c0_28, %c0_29] : memref<1x4x16x128xf32, #tpu.memory_space<vmem>>, vector<1x1x16x128xf32>
      %46 = vector.shape_cast %45 : vector<1x1x16x128xf32> to vector<16x128xf32>
      %47 = vector.shape_cast %43 : vector<16x128xf32> to vector<1x1x16x128xf32>
      tpu.vector_store %arg4[%c0_27, %44, %c0_28, %c0_29], %47 {strides = array<i32>} : memref<1x4x16x128xf32, #tpu.memory_space<vmem>>, vector<1x1x16x128xf32>,
      %c4_i32 = arith.constant 4 : i32
    } else {
    }
    return
  }
  func.func @transform_0(%arg0: i32, %arg1: i32, %arg2: memref<2xi32, #tpu.memory_space<smem>>) -> (i32, i32, i32, i32) {
    %c0_i32 = arith.constant 0 : i32
    %c0_i32_0 = arith.constant 0 : i32
    %c0_i32_1 = arith.constant 0 : i32
    return %arg0, %arg1, %c0_i32, %c0_i32_0 : i32, i32, i32, i32
  }
  func.func @transform_1(%arg0: i32, %arg1: i32, %arg2: memref<2xi32, #tpu.memory_space<smem>>) -> (i32, i32, i32, i32) {
    %c0_i32 = arith.constant 0 : i32
    %c0_i32_0 = arith.constant 0 : i32
    %c0_i32_1 = arith.constant 0 : i32
    return %arg0, %arg1, %c0_i32, %c0_i32_0 : i32, i32, i32, i32
  }
}

</mosaic_0001>

<llo_original>
// kernel: tpu_custom_call.1
$region0: #{tpu_custom_call.1}
  #allocation0 [shape = 'u32[]', space=smem, size = 0x4, offset = 0x4, fixed_abs, tag = 'smem constant byte address 0x4 - core index']
  #allocation1 [shape = 'u32[72,128]{1,0:T(1,128)}', space=vmem, size = 0x9000, scoped, tag = 'internal scratch']
  #allocation2 [shape = 's32[1]{0}', space=sflag, size = 0x4, scoped, tag = 'scoped memory for tpu_custom_call.1']
  #allocation3 [shape = 'u8[512]{0}', space=smem, size = 0x200, scoped, tag = 'prefetched SMEM operand 0']
  %s0 = inlined_call_operand.hbm [shape: s32[2], index: 0, kind: input, shape index: {}]
  %s1 = inlined_call_operand.hbm [shape: f32[2,4,16,128], index: 1, kind: input, shape index: {}]
  %s2 = inlined_call_operand.hbm [shape: f32[2,4,16,128], index: 2, kind: output, shape index: {}]
  %s3 = sld [smem:[#allocation0]]
  $region49: #{tpu_custom_call.1} parent=0
    _
  %s5 = ssub.s32 1, %s3
  %s6 = scalar_select 0, %s5, %s3
  %s8 = sshll.u32 %s0, 4
  %s9 = int_to_ptr.hbm [resolvable:$true] %s8
  %11 = dma.hbm_to_smem %s9, 16, [#allocation3], [#allocation2]
  %13 = dma.done [#allocation2], 16
  %14 = sfence
  $region1: #{tpu_custom_call.1} parent=0
    #allocation4 [shape = 'u8[65536]{0}', space=vmem, size = 0x10000, scoped, tag = 'input window, operand 1']
    #allocation5 [shape = 's32[2]{0}', space=sflag, size = 0x8, scoped, tag = 'scoped memory for tpu_custom_call.1']
    #allocation6 [shape = 's32[2]{0}', space=sflag, size = 0x8, scoped, tag = 'scoped memory for tpu_custom_call.1']
    #allocation7 [shape = 'u8[65536]{0}', space=vmem, size = 0x10000, scoped, tag = 'output window, operand 0']
    %15 = vsyncpa [#allocation5], 0
    %s16 = scalar_lea.sflag [#allocation5], 1
    %17 = vsyncpa %s16, 0
    %18 = vsyncpa [#allocation6], 0
    %s19 = scalar_lea.sflag [#allocation6], 1
    %20 = vsyncpa %s19, 0
    loop: start=0, step=1, limit=4
    $region2: #{tpu_custom_call.1} parent=1 // loop_pre_header
      _
    $region3: #{tpu_custom_call.1} parent=1 // loop_header
      %s22 = sphi 0, %s26
      %p23 = scmp.ge.s32.totalorder %s22, 4
      %s29 = sphi 0, %s41
      %s30 = sphi 0, %s37
      %s31 = sphi 0, %s29
      %s32 = sphi 0, %s30
      %s33 = sphi 0, %s31
      %s34 = sphi 0, %s32
      %s46 = sphi 0, %s48
      %s49 = sphi 0, %s46
      %s50 = sphi 0, %s49
      %s66 = sphi 0, %s50
      %s74 = sphi 0, %s76
      %s77 = sphi 0, %s74
      %s78 = sphi 0, %s77
      %s94 = sphi 0, %s78
    $region4: #{tpu_custom_call.1} parent=1 // loop_header_branch
      %25 = sbr.rel (%p23) target = $region8
    $region5: #{tpu_custom_call.1} parent=1 // loop_body
      %s27 = ssub.s32 %s22, 1
      %s28 = ssub.s32 %s22, 2
      %s35 = sadd.s32 1, %s30
      %p36 = scmp.ge.s32.totalorder %s35, 1
      %s37 = scalar_select %p36, 0, %s35
      %s38 = sadd.s32 1, %s29
      %s39 = scalar_select %p36, %s38, %s29
      %p40 = scmp.ge.s32.totalorder %s39, 2
      %s41 = scalar_select %p40, 0, %s39
      %s42 = ssub.s32 %s29, %s41
      %s43 = ssub.s32 %s30, %s37
      %s44 = sor.u32 %s42, %s43
      %p45 = scmp.eq.s32.totalorder %s44, 0
      %s47 = sadd.s32 %s46, 1
      %s48 = scalar_select %p45, %s46, %s47
      %p51 = pneg %p45
      %p52 = scmp.eq.s32.totalorder %s22, 1
      %p53 = por %p51, %p52
      %p54 = scmp.ne.s32.totalorder %s46, %s49
      %p55 = scmp.eq.s32.totalorder %s22, 0
      %p56 = por %p54, %p55
      %p57 = scmp.ne.s32.totalorder %s46, %s49
      %p58 = scmp.eq.s32.totalorder %s27, 1
      %p59 = por %p57, %p58
      %p60 = scmp.ne.s32.totalorder %s49, %s50
      %p61 = scmp.eq.s32.totalorder %s27, 0
      %p62 = por %p60, %p61
      %p63 = scmp.ne.s32.totalorder %s49, %s50
      %p64 = scmp.eq.s32.totalorder %s28, 1
      %p65 = por %p63, %p64
      %p67 = scmp.ne.s32.totalorder %s50, %s66
      %p68 = scmp.eq.s32.totalorder %s28, 0
      %p69 = por %p67, %p68
      %s70 = ssub.s32 %s29, %s41
      %s71 = ssub.s32 %s30, %s37
      %s72 = sor.u32 %s70, %s71
      %p73 = scmp.eq.s32.totalorder %s72, 0
      %s75 = sadd.s32 %s74, 1
      %s76 = scalar_select %p73, %s74, %s75
      %p79 = pneg %p73
      %p80 = scmp.eq.s32.totalorder %s22, 1
      %p81 = por %p79, %p80
      %p82 = scmp.ne.s32.totalorder %s74, %s77
      %p83 = scmp.eq.s32.totalorder %s22, 0
      %p84 = por %p82, %p83
      %p85 = scmp.ne.s32.totalorder %s74, %s77
      %p86 = scmp.eq.s32.totalorder %s27, 1
      %p87 = por %p85, %p86
      %p88 = scmp.ne.s32.totalorder %s77, %s78
      %p89 = scmp.eq.s32.totalorder %s27, 0
      %p90 = por %p88, %p89
      %p91 = scmp.ne.s32.totalorder %s77, %s78
      %p92 = scmp.eq.s32.totalorder %s28, 1
      %p93 = por %p91, %p92
      %p95 = scmp.ne.s32.totalorder %s78, %s94
      %p96 = scmp.eq.s32.totalorder %s28, 0
      %p97 = por %p95, %p96
      %p98 = scmp.le.s32.totalorder 1, %s22
      %p99 = scmp.lt.s32.totalorder %s22, 3
      %p100 = pnand %p98, %p99
      %p101 = pneg %p100
      // Predicated region
      $region9: #{tpu_custom_call.1} parent=5 // pred_check
        _
      $region10: #{tpu_custom_call.1} parent=5 // pred_check_branch
        %103 = sbr.rel (%p100) target = $region12
      $region11: #{tpu_custom_call.1} parent=5 // pred_region
        %s104 = ssub.s32 %s22, 1
      $region12: #{tpu_custom_call.1} parent=5 // pred_fallthru
        _
      %p105 = scmp.lt.s32.totalorder %s22, 2
      // Predicated region
      $region13: #{tpu_custom_call.1} parent=5 // pred_check
        %p106 = pneg %p105
      $region14: #{tpu_custom_call.1} parent=5 // pred_check_branch
        %108 = sbr.rel (%p106) target = $region16
      $region15: #{tpu_custom_call.1} parent=5 // pred_region
        // Predicated region
        $region17: #{tpu_custom_call.1} parent=15 // pred_check
          %p109 = pneg %p56
        $region18: #{tpu_custom_call.1} parent=15 // pred_check_branch
          %111 = sbr.rel (%p109) target = $region20
        $region19: #{tpu_custom_call.1} parent=15 // pred_region
          %s112 = sand.u32 %s46, 1
          %s113 = scalar_lea.sflag [#allocation5], %s112
          %s114 = sand.u32 %s46, 1
          %s115 = smul.addr %s114, 64
          %s116 = scalar_lea.vmem [#allocation4], %s115
          %s117 = smul.u32 4, %s30
          %119 = vsyncadd %s113, 0
          %s120 = smul.addr %s117, 2
          %s121 = smul.addr %s29, 8
          %s122 = sadd.s32 %s120, %s121
          %s123 = smul.addr %s122, 8
          %s124 = scalar_lea.hbm %s1, %s123
          %s125 = sshll.u32 %s124, 4
          %s126 = int_to_ptr.hbm [resolvable:$true] %s125
          %s127 = sshll.u32 %s116, 4
          %s128 = int_to_ptr.vmem [resolvable:$true] %s127
          %133 = dma.hbm_to_vmem [thread:$0]  %s126, 1024, %s128, %s113, 128, 128, 8
        $region20: #{tpu_custom_call.1} parent=15 // pred_fallthru
          _
      $region16: #{tpu_custom_call.1} parent=5 // pred_fallthru
        _
      %p134 = scmp.le.s32.totalorder 1, %s22
      %p135 = scmp.lt.s32.totalorder %s22, 3
      %p136 = pnand %p134, %p135
      %p137 = pneg %p136
      // Predicated region
      $region21: #{tpu_custom_call.1} parent=5 // pred_check
        _
      $region22: #{tpu_custom_call.1} parent=5 // pred_check_branch
        %139 = sbr.rel (%p136) target = $region24
      $region23: #{tpu_custom_call.1} parent=5 // pred_region
        %s140 = ssub.s32 %s22, 1
        %s141 = sand.u32 %s49, 1
        %s142 = scalar_lea.sflag [#allocation5], %s141
        %s143 = sand.u32 %s49, 1
        %s144 = smul.addr %s143, 64
        %s145 = scalar_lea.vmem [#allocation4], %s144
        // Predicated region
        $region25: #{tpu_custom_call.1} parent=23 // pred_check
          %p146 = pneg %p62
        $region26: #{tpu_custom_call.1} parent=23 // pred_check_branch
          %148 = sbr.rel (%p146) target = $region28
        $region27: #{tpu_custom_call.1} parent=23 // pred_region
          %150 = dma.done %s142, 1024
        $region28: #{tpu_custom_call.1} parent=23 // pred_fallthru
          _
        %s151 = sand.u32 %s49, 1
        %s152 = scalar_lea.sflag [#allocation5], %s151
        %s153 = sand.u32 %s49, 1
        %s154 = smul.addr %s153, 64
        %s155 = scalar_lea.vmem [#allocation4], %s154
        %p156 = pneg %p62
        %p157 = pneg %p59
        %p158 = pneg %p90
        %p159 = pneg %p87
        %s160 = sand.u32 %s77, 1
        %s161 = scalar_lea.sflag [#allocation6], %s160
        %s162 = sand.u32 %s77, 1
        %s163 = smul.addr %s162, 64
        %s164 = scalar_lea.vmem [#allocation7], %s163
        %s165 = smul.u32 4, %s32
        %s166 = smul.u32 4, %s32
        %s167 = sld [smem:[#allocation3]]
        %s168 = sld [smem:[#allocation3 + $0x1]]
        %p169 = scmp.eq.s32.totalorder %s167, 0
        %p170 = scmp.eq.s32.totalorder %s168, 0
        %p171 = pnand %p169, %p170
        %p172 = pneg %p171
        // Predicated region
        $region29: #{tpu_custom_call.1} parent=23 // pred_check
          _
        $region30: #{tpu_custom_call.1} parent=23 // pred_check_branch
          %174 = sbr.rel (%p171) target = $region32
        $region31: #{tpu_custom_call.1} parent=23 // pred_region
          %v175 = vld [vmem:[%s145] sm:$0xff]
          %v176 = vld [vmem:[%s145 + $0x8] sm:$0xff]
          %v177 = vld [vmem:[%s145 + $0x10] sm:$0xff]
          %v178 = vld [vmem:[%s145 + $0x18] sm:$0xff]
          %v179 = vld [vmem:[%s145 + $0x20] sm:$0xff]
          %v180 = vld [vmem:[%s145 + $0x28] sm:$0xff]
          %v181 = vld [vmem:[%s145 + $0x30] sm:$0xff]
          %v182 = vld [vmem:[%s145 + $0x38] sm:$0xff]
          %183 = vst [vmem:[%s164] sm:$0xff] %v175
          %184 = vst [vmem:[%s164 + $0x8] sm:$0xff] %v176
          %185 = vst [vmem:[%s164 + $0x10] sm:$0xff] %v177
          %186 = vst [vmem:[%s164 + $0x18] sm:$0xff] %v178
          %187 = vst [vmem:[%s164 + $0x20] sm:$0xff] %v179
          %188 = vst [vmem:[%s164 + $0x28] sm:$0xff] %v180
          %189 = vst [vmem:[%s164 + $0x30] sm:$0xff] %v181
          %190 = vst [vmem:[%s164 + $0x38] sm:$0xff] %v182
        $region32: #{tpu_custom_call.1} parent=23 // pred_fallthru
          _
        %p191 = scmp.ne.s32.totalorder %s167, 0
        %p192 = scmp.ne.s32.totalorder %s168, 0
        %p193 = por %p191, %p192
        // Predicated region
        $region33: #{tpu_custom_call.1} parent=23 // pred_check
          %p194 = pneg %p193
        $region34: #{tpu_custom_call.1} parent=23 // pred_check_branch
          %196 = sbr.rel (%p194) target = $region36
        $region35: #{tpu_custom_call.1} parent=23 // pred_region
          %v197 = vld [vmem:[%s145] sm:$0xff]
          %v198 = vld [vmem:[%s145 + $0x8] sm:$0xff]
          %s199 = sand.u32 %s167, 15
          %s200 = sand.u32 %s199, 7
          %s201 = sshrl.u32 %s199, 3
          %s202 = ssub.s32 8, %s200
          %v203 = vstv %s202
          %v204 = vrot.slane %v197, %v203
          %v205 = vstv %s202
          %v206 = vrot.slane %v198, %v205
          %v207 = vstv %s200
          %v208 = vlaneseq
          %v209 = vshrl.u32 %v208, 7
          %vm210 = vcmp.lt.s32.totalorder %v209, %v207
          %v211 = vsel %vm210, %v204, %v206
          %v212 = vsel %vm210, %v206, %v204
          %s213 = sand.u32 %s201, 1
          %v214 = vstv %s213
          %vm215 = vcmp.ne.s32.totalorder %v214, 0
          %v216 = vsel %vm215, %v211, %v212
          %v217 = vsel %vm215, %v212, %v211
          %s218 = sand.u32 %s168, 127
          %s219 = sand.u32 %s218, 127
          %220 = vrot.lane.b32.xlu0 %v216, %s219
          %v221 = vpop.permute.xlu0 %220
          %222 = vrot.lane.b32.xlu0 %v217, %s219
          %v223 = vpop.permute.xlu0 %222
          %224 = vst [vmem:[%s164] sm:$0xff] %v221
          %225 = vst [vmem:[%s164 + $0x8] sm:$0xff] %v223
          %s226 = scalar_lea.vmem %s145, 16 [#allocation4]
          %v227 = vld [vmem:[%s226] sm:$0xff]
          %v228 = vld [vmem:[%s226 + $0x8] sm:$0xff]
          %v229 = vstv %s202
          %v230 = vrot.slane %v227, %v229
          %v231 = vstv %s202
          %v232 = vrot.slane %v228, %v231
          %v233 = vsel %vm210, %v230, %v232
          %v234 = vsel %vm210, %v232, %v230
          %v235 = vsel %vm215, %v233, %v234
          %v236 = vsel %vm215, %v234, %v233
          %237 = vrot.lane.b32.xlu0 %v235, %s219
          %v238 = vpop.permute.xlu0 %237
          %239 = vrot.lane.b32.xlu0 %v236, %s219
          %v240 = vpop.permute.xlu0 %239
          %s241 = scalar_lea.vmem %s164, 16 [#allocation7]
          %242 = vst [vmem:[%s241] sm:$0xff] %v238
          %243 = vst [vmem:[%s241 + $0x8] sm:$0xff] %v240
          %s244 = scalar_lea.vmem %s145, 32 [#allocation4]
          %v245 = vld [vmem:[%s244] sm:$0xff]
          %v246 = vld [vmem:[%s244 + $0x8] sm:$0xff]
          %v247 = vstv %s202
          %v248 = vrot.slane %v245, %v247
          %v249 = vstv %s202
          %v250 = vrot.slane %v246, %v249
          %v251 = vsel %vm210, %v248, %v250
          %v252 = vsel %vm210, %v250, %v248
          %v253 = vsel %vm215, %v251, %v252
          %v254 = vsel %vm215, %v252, %v251
          %255 = vrot.lane.b32.xlu0 %v253, %s219
          %v256 = vpop.permute.xlu0 %255
          %257 = vrot.lane.b32.xlu0 %v254, %s219
          %v258 = vpop.permute.xlu0 %257
          %s259 = scalar_lea.vmem %s164, 32 [#allocation7]
          %260 = vst [vmem:[%s259] sm:$0xff] %v256
          %261 = vst [vmem:[%s259 + $0x8] sm:$0xff] %v258
          %s262 = scalar_lea.vmem %s145, 48 [#allocation4]
          %v263 = vld [vmem:[%s262] sm:$0xff]
          %v264 = vld [vmem:[%s262 + $0x8] sm:$0xff]
          %v265 = vstv %s202
          %v266 = vrot.slane %v263, %v265
          %v267 = vstv %s202
          %v268 = vrot.slane %v264, %v267
          %v269 = vsel %vm210, %v266, %v268
          %v270 = vsel %vm210, %v268, %v266
          %v271 = vsel %vm215, %v269, %v270
          %v272 = vsel %vm215, %v270, %v269
          %273 = vrot.lane.b32.xlu0 %v271, %s219
          %v274 = vpop.permute.xlu0 %273
          %275 = vrot.lane.b32.xlu0 %v272, %s219
          %v276 = vpop.permute.xlu0 %275
          %s277 = scalar_lea.vmem %s164, 48 [#allocation7]
          %278 = vst [vmem:[%s277] sm:$0xff] %v274
          %279 = vst [vmem:[%s277 + $0x8] sm:$0xff] %v276
        $region36: #{tpu_custom_call.1} parent=23 // pred_fallthru
          _
        %s280 = sand.u32 %s77, 1
        %s281 = scalar_lea.sflag [#allocation6], %s280
        %s282 = sand.u32 %s77, 1
        %s283 = smul.addr %s282, 64
        %s284 = scalar_lea.vmem [#allocation7], %s283
        // Predicated region
        $region37: #{tpu_custom_call.1} parent=23 // pred_check
          %p285 = pneg %p87
        $region38: #{tpu_custom_call.1} parent=23 // pred_check_branch
          %287 = sbr.rel (%p285) target = $region40
        $region39: #{tpu_custom_call.1} parent=23 // pred_region
          %s288 = smul.u32 4, %s32
          %290 = vsyncadd %s281, 0
          %s291 = smul.addr %s288, 2
          %s292 = smul.addr %s31, 8
          %s293 = sadd.s32 %s291, %s292
          %s294 = smul.addr %s293, 8
          %s295 = scalar_lea.hbm %s2, %s294
          %s296 = sshll.u32 %s284, 4
          %s297 = int_to_ptr.vmem [resolvable:$true] %s296
          %s298 = sshll.u32 %s295, 4
          %s299 = int_to_ptr.hbm [resolvable:$true] %s298
          %304 = dma.vmem_to_hbm [thread:$0]  %s297, 1024, %s299, %s281, 128, 128, 8
        $region40: #{tpu_custom_call.1} parent=23 // pred_fallthru
          _
      $region24: #{tpu_custom_call.1} parent=5 // pred_fallthru
        _
      %p305 = scmp.le.s32.totalorder 2, %s22
      // Predicated region
      $region41: #{tpu_custom_call.1} parent=5 // pred_check
        %p306 = pneg %p305
      $region42: #{tpu_custom_call.1} parent=5 // pred_check_branch
        %308 = sbr.rel (%p306) target = $region44
      $region43: #{tpu_custom_call.1} parent=5 // pred_region
        %s309 = ssub.s32 %s22, 2
        // Predicated region
        $region45: #{tpu_custom_call.1} parent=43 // pred_check
          %p310 = pneg %p93
        $region46: #{tpu_custom_call.1} parent=43 // pred_check_branch
          %312 = sbr.rel (%p310) target = $region48
        $region47: #{tpu_custom_call.1} parent=43 // pred_region
          %s313 = sand.u32 %s78, 1
          %s314 = scalar_lea.sflag [#allocation6], %s313
          %s315 = sand.u32 %s78, 1
          %s316 = smul.addr %s315, 64
          %s317 = scalar_lea.vmem [#allocation7], %s316
          %319 = dma.done %s314, 1024
        $region48: #{tpu_custom_call.1} parent=43 // pred_fallthru
          _
      $region44: #{tpu_custom_call.1} parent=5 // pred_fallthru
        _
    $region6: #{tpu_custom_call.1} parent=1 // loop_footer
      %s26 = sadd.s32 1, %s22
    $region7: #{tpu_custom_call.1} parent=1 // loop_footer_branch
      %21 = sbr.rel target = $region3
    $region8: #{tpu_custom_call.1} parent=1 // loop_exit
      _
    %320 = vsyncpa [#allocation5], 1
    %s321 = scalar_lea.sflag [#allocation5], 1
    %322 = vsyncpa %s321, 1
    %323 = vsyncpa [#allocation6], 1
    %s324 = scalar_lea.sflag [#allocation6], 1
    %325 = vsyncpa %s324, 1

</llo_original>
